<compile_context>
chip_gen: v5e
topology: v5e:2x2
jax: 0.10.0
libtpu: 0.0.40
codegen_flags: <defaults>
</compile_context>

<pallas_src>
import numpy as np
import jax
import jax.numpy as jnp
from jax.experimental import pallas as pl
from jax.experimental.pallas import tpu as pltpu


def _round_up(x, m):
    return ((x + m - 1) // m) * m


# ----------------- Pass 1: per-edge messages, grid over E only --------------
def message_kernel(xs_ref, basis_ref, msg_ref):
    """msg = x_scaled @ basis_flat  (fused K = num_bases * C_in matmul).

    xs_ref    : [E_t, B*C_in]      bf16
    basis_ref : [B*C_in, C_out_p]  bf16 (constant index_map -> resident)
    msg_ref   : [E_t, C_out_p]     bf16
    """
    msg_ref[...] = jnp.dot(
        xs_ref[...], basis_ref[...],
        preferred_element_type=jnp.float32).astype(msg_ref.dtype)


# ----------------- Pass 2: scatter-mean + ReLU over (N, E) grid -------------
def scatter_kernel(scatter_ref, msg_ref, invdeg_ref, out_ref):
    """Segment-sum of messages into dst nodes, then mean + ReLU.

    scatter_ref : [N_t, E_t]      bf16 (0/1 one-hot of dst)
    msg_ref     : [E_t, C_out_p]  bf16
    invdeg_ref  : [N_t, 1]        f32
    out_ref     : [N_t, C_out_p]  f32  (same block across E -> accumulator)
    """
    e_step = pl.program_id(1)

    @pl.when(e_step == 0)
    def _():
        out_ref[...] = jnp.zeros_like(out_ref)

    out_ref[...] += jnp.dot(scatter_ref[...], msg_ref[...],
                            preferred_element_type=jnp.float32)

    @pl.when(e_step == pl.num_programs(1) - 1)
    def _():
        out_ref[...] = jnp.maximum(out_ref[...] * invdeg_ref[...], 0.0)


def _build_graph(unseen_entity, triplets, num_relations):
    src, rel, dst = triplets.T
    uniq_v, edges = np.unique(np.stack((src, dst)), return_inverse=True)
    src_l, dst_l = np.reshape(edges, (2, -1))
    unseen_index = int(np.where(uniq_v == unseen_entity)[0][0])
    rel_index = np.concatenate((rel, rel))
    src_l, dst_l = np.concatenate((src_l, dst_l)), np.concatenate((dst_l, src_l))
    rel_all = np.concatenate((rel, rel + num_relations))
    return uniq_v, src_l, dst_l, rel_index, rel_all, unseen_index


def entity_embedding_forward(unseen_entity, triplets, params, num_relations,
                             *, n_tile=256, e_tile=512):
    # n_tile=128 is a good choice on v5e (128-wide MXU); 256 fills v6e/v7x.
    ent_w, rel_w, basis, att = params
    uniq_v, src_l, dst_l, rel_index, rel_all, unseen_index = _build_graph(
        unseen_entity, triplets, num_relations)

    n_nodes = int(uniq_v.shape[0])
    n_edges = int(src_l.shape[0])
    num_bases, c_in, c_out = basis.shape
    k_dim = num_bases * c_in
    c_out_p = _round_up(c_out, 128)              # lane-dense output slab
    n_pad = _round_up(max(n_nodes, n_tile), n_tile)
    e_pad = _round_up(max(n_edges, e_tile), e_tile)

    # ---- host/XLA glue: embedding gathers, att scaling, tile padding ------
    x = ent_w[jnp.asarray(uniq_v)]                               # [N, ent_dim]
    rel_emb = rel_w[jnp.asarray(rel_index)]                      # [E, rel_dim]
    x_cat = jnp.concatenate((x[jnp.asarray(src_l)], rel_emb), axis=1)  # [E, C_in]
    att_e = att[jnp.asarray(rel_all)]                            # [E, B]
    # x_scaled[:, b*C_in + c] = att_e[:, b] * x_cat[:, c]   (f32 -> bf16 once)
    x_scaled = (att_e[:, :, None] * x_cat[:, None, :]).reshape(n_edges, k_dim)
    x_scaled_p = jnp.zeros((e_pad, k_dim), jnp.bfloat16).at[:n_edges].set(
        x_scaled.astype(jnp.bfloat16))

    # Basis flattened for the fused matmul; output lanes zero-padded to 128.
    basis_flat = jnp.zeros((k_dim, c_out_p), jnp.bfloat16)
    basis_flat = basis_flat.at[:, :c_out].set(
        basis.reshape(k_dim, c_out).astype(jnp.bfloat16))

    # 0/1 dst one-hot scatter (bf16); padded edges get dst = -1 (no match).
    dst_pad = np.full((e_pad,), -1, np.int32)
    dst_pad[:n_edges] = dst_l
    onehot = (jnp.asarray(dst_pad)[None, :] ==
              jnp.arange(n_pad, dtype=jnp.int32)[:, None])
    deg = onehot.sum(axis=1, keepdims=True).astype(jnp.float32)
    inv_deg = 1.0 / jnp.maximum(deg, 1.0)                        # [N_pad, 1]
    scatter01 = onehot.astype(jnp.bfloat16)                      # [N_pad, E_pad]

    # ---- Pass 1: per-edge messages (O(E), never recomputed per N tile) ----
    msg = pl.pallas_call(
        message_kernel,
        out_shape=jax.ShapeDtypeStruct((e_pad, c_out_p), jnp.bfloat16),
        grid_spec=pltpu.PrefetchScalarGridSpec(
            num_scalar_prefetch=0,
            grid=(e_pad // e_tile,),
            in_specs=[
                pl.BlockSpec((e_tile, k_dim), lambda e: (e, 0)),
                pl.BlockSpec((k_dim, c_out_p), lambda e: (0, 0)),
            ],
            out_specs=pl.BlockSpec((e_tile, c_out_p), lambda e: (e, 0)),
        ),
        compiler_params=pltpu.CompilerParams(
            dimension_semantics=("parallel",),
            vmem_limit_bytes=32 * 1024 * 1024,
        ),
    )(x_scaled_p, basis_flat)

    # ---- Pass 2: scatter-mean + ReLU; E is the (last) reduction axis ------
    out = pl.pallas_call(
        scatter_kernel,
        out_shape=jax.ShapeDtypeStruct((n_pad, c_out_p), jnp.float32),
        grid_spec=pltpu.PrefetchScalarGridSpec(
            num_scalar_prefetch=0,
            grid=(n_pad // n_tile, e_pad // e_tile),
            in_specs=[
                pl.BlockSpec((n_tile, e_tile), lambda n, e: (n, e)),
                pl.BlockSpec((e_tile, c_out_p), lambda n, e: (e, 0)),
                pl.BlockSpec((n_tile, 1), lambda n, e: (n, 0)),
            ],
            out_specs=pl.BlockSpec((n_tile, c_out_p), lambda n, e: (n, 0)),
        ),
        compiler_params=pltpu.CompilerParams(
            # "parallel" N axis shards across v7x's 2 TensorCores when the
            # graph is big enough for >= 2 N tiles; no-op on v5e/v6e.
            dimension_semantics=("parallel", "arbitrary"),
            vmem_limit_bytes=32 * 1024 * 1024,
        ),
    )(scatter01, msg, inv_deg)

    # TODO(synk): for very large graphs replace the dense [N_pad, E_pad] 0/1
    # scatter with scalar-prefetched dst indices + true segment accumulation
    # (O(E*C_out) traffic instead of O(N*E)).
    # Dropout is eval-mode identity; ReLU already applied in-kernel.
    return out[unseen_index, :c_out]


def reference_forward(unseen_entity, triplets, params, num_relations):
    """Pure numpy reference mirroring the PyTorch GENConv semantics."""
    ent_w, rel_w, basis, att = [np.asarray(p, np.float32) for p in params]
    uniq_v, src_l, dst_l, rel_index, rel_all, unseen_index = _build_graph(
        unseen_entity, triplets, num_relations)
    x = ent_w[uniq_v]
    x_j = np.concatenate((x[src_l], rel_w[rel_index]), axis=1)           # [E, C_in]
    B, c_in, c_out = basis.shape
    w = (att @ basis.reshape(B, -1)).reshape(-1, c_in, c_out)[rel_all]   # [E, C_in, C_out]
    msg = np.einsum('ec,eco->eo', x_j, w)                                # bmm
    n_nodes = uniq_v.shape[0]
    agg = np.zeros((n_nodes, c_out), np.float32)
    cnt = np.zeros((n_nodes, 1), np.float32)
    np.add.at(agg, dst_l, msg)
    np.add.at(cnt, dst_l, 1.0)
    agg = agg / np.maximum(cnt, 1.0)                                     # mean aggr
    return np.maximum(agg[unseen_index], 0.0)                            # relu; dropout=eval


if __name__ == "__main__":
    # Small, forward-consistent shapes.
    ent_dim, rel_dim = 32, 16
    num_entities, num_relations = 20, 5
    bases = 4
    num_triplets = 8
    c_in, c_out = ent_dim + rel_dim, ent_dim
    num_rel_doubled = 2 * num_relations

    key = jax.random.PRNGKey(0)
    k1, k2, k3, k4, k5, k6, k7 = jax.random.split(key, 7)

    # nn.Embedding default init ~ N(0,1)
    ent_w = jax.random.normal(k1, (num_entities, ent_dim), jnp.float32)
    # relation_embedding: xavier_uniform with relu gain
    gain = float(np.sqrt(2.0))
    xbound = gain * float(np.sqrt(6.0 / (num_relations + rel_dim)))
    rel_w = jax.random.uniform(k2, (num_relations, rel_dim), jnp.float32, -xbound, xbound)
    # GENConv: PyG uniform(size = num_bases * in_channels)
    ubound = 1.0 / float(np.sqrt(bases * c_in))
    basis = jax.random.uniform(k3, (bases, c_in, c_out), jnp.float32, -ubound, ubound)
    att = jax.random.uniform(k4, (num_rel_doubled, bases), jnp.float32, -ubound, ubound)
    # root_weight=False, bias=False -> no root / bias parameters.

    # Synthetic triplets (src, rel, dst)
    src = np.asarray(jax.random.randint(k5, (num_triplets,), 0, num_entities))
    dst = np.asarray(jax.random.randint(k6, (num_triplets,), 0, num_entities))
    rel = np.asarray(jax.random.randint(k7, (num_triplets,), 0, num_relations))
    triplets = np.stack([src, rel, dst], axis=1).astype(np.int64)
    unseen_entity = int(triplets[0, 0])

    params = (ent_w, rel_w, basis, att)
    out = entity_embedding_forward(unseen_entity, triplets, params, num_relations)
    out = jax.block_until_ready(out)

    ref = reference_forward(unseen_entity, triplets, params, num_relations)
    # bf16 MXU operands (f32 accumulation) -> loosened tolerance vs f32 reference.
    np.testing.assert_allclose(np.asarray(out), ref, rtol=2e-2, atol=5e-3)
    print("KERNEL_OK")
</pallas_src>

<mosaic_0001>
module attributes {stable_mosaic.version = 11 : i64} {
  func.func @message_kernel(%arg0: i32, %arg1: memref<512x192xbf16, #tpu.memory_space<vmem>>, %arg2: memref<192x128xbf16, #tpu.memory_space<vmem>>, %arg3: memref<512x128xbf16, #tpu.memory_space<vmem>>) attributes {dimension_semantics = [#tpu.dimension_semantics<parallel>], iteration_bounds = array<i64: 1>, scalar_prefetch = 0 : i64, scratch_operands = 0 : i64, tpu.core_type = #tpu.core_type<tc>, window_params = [{transform_indices = @transform_0, window_bounds = array<i64: 512, 192>}, {pipeline_mode = #tpu.pipeline_mode<synchronous>, transform_indices = @transform_1, window_bounds = array<i64: 192, 128>}, {transform_indices = @transform_2, window_bounds = array<i64: 512, 128>}]} {
    %c0 = arith.constant 0 : index
    %c0_0 = arith.constant 0 : index
    %0 = vector.load %arg1[%c0, %c0_0] : memref<512x192xbf16, #tpu.memory_space<vmem>>, vector<512x192xbf16>
    %c0_1 = arith.constant 0 : index
    %c0_2 = arith.constant 0 : index
    %1 = vector.load %arg2[%c0_1, %c0_2] : memref<192x128xbf16, #tpu.memory_space<vmem>>, vector<192x128xbf16>
    %cst = arith.constant dense<0.000000e+00> : vector<512x128xf32>
    %2 = tpu.matmul %0, %1, %cst {dimension_numbers = #tpu.dot_dimension_numbers<[1], [0], [0], [1], [0, 0, 1, 1], [], []>} : vector<512x192xbf16>, vector<192x128xbf16>, vector<512x128xf32> -> vector<512x128xf32>
    %3 = arith.truncf %2 : vector<512x128xf32> to vector<512x128xbf16>
    %c0_3 = arith.constant 0 : index
    %c0_4 = arith.constant 0 : index
    %4 = vector.load %arg3[%c0_3, %c0_4] : memref<512x128xbf16, #tpu.memory_space<vmem>>, vector<512x128xbf16>
    tpu.vector_store %arg3[%c0_3, %c0_4], %3 {strides = array<i32>} : memref<512x128xbf16, #tpu.memory_space<vmem>>, vector<512x128xbf16>,
    return
  }
  func.func @transform_0(%arg0: i32) -> (i32, i32) {
    %c0_i32 = arith.constant 0 : i32
    %c0_i32_0 = arith.constant 0 : i32
    return %arg0, %c0_i32 : i32, i32
  }
  func.func @transform_1(%arg0: i32) -> (i32, i32) {
    %c0_i32 = arith.constant 0 : i32
    %c0_i32_0 = arith.constant 0 : i32
    %c0_i32_1 = arith.constant 0 : i32
    return %c0_i32, %c0_i32_0 : i32, i32
  }
  func.func @transform_2(%arg0: i32) -> (i32, i32) {
    %c0_i32 = arith.constant 0 : i32
    %c0_i32_0 = arith.constant 0 : i32
    return %arg0, %c0_i32 : i32, i32
  }
}

</mosaic_0001>

<llo_original>
// kernel: tpu_custom_call.1
$region0: #{tpu_custom_call.1}
  #allocation0 [shape = 'u32[]', space=smem, size = 0x4, offset = 0x4, fixed_abs, tag = 'smem constant byte address 0x4 - core index']
  #allocation1 [shape = 'u32[72,128]{1,0:T(1,128)}', space=vmem, size = 0x9000, scoped, tag = 'internal scratch']
  %s0 = inlined_call_operand.vmem [shape: bf16[512,192], index: 0, kind: input, shape index: {}]
  %s1 = inlined_call_operand.vmem [shape: bf16[192,128], index: 1, kind: input, shape index: {}]
  %s2 = inlined_call_operand.hbm [shape: bf16[512,128], index: 2, kind: output, shape index: {}]
  %s3 = sld [smem:[#allocation0]]
  $region18: #{tpu_custom_call.1} parent=0
    _
  %s5 = ssub.s32 1, %s3
  %s6 = scalar_select 0, %s5, %s3
  $region1: #{tpu_custom_call.1} parent=0
    #allocation2 [shape = 'u8[131072]{0}', space=vmem, size = 0x20000, scoped, tag = 'output window, operand 0, single buffered']
    #allocation3 [shape = 's32[1]{0}', space=sflag, size = 0x4, scoped, tag = 'scoped memory for tpu_custom_call.1']
    %7 = vsyncpa [#allocation3], 0
    // Predicated region
    $region2: #{tpu_custom_call.1} parent=1 // pred_check
      _
    $region3: #{tpu_custom_call.1} parent=1 // pred_check_branch
      %9 = sbr.rel (0) target = $region5
    $region4: #{tpu_custom_call.1} parent=1 // pred_region
      _
    $region5: #{tpu_custom_call.1} parent=1 // pred_fallthru
      _
    // Predicated region
    $region6: #{tpu_custom_call.1} parent=1 // pred_check
      _
    $region7: #{tpu_custom_call.1} parent=1 // pred_check_branch
      %11 = sbr.rel (0) target = $region9
    $region8: #{tpu_custom_call.1} parent=1 // pred_region
      _
    $region9: #{tpu_custom_call.1} parent=1 // pred_fallthru
      _
    %v13 = vld [vmem:[%s0] sm:$0xff]
    %v14 = vld [vmem:[%s0 + $0x8] sm:$0xff]
    %v15 = vld [vmem:[%s0 + $0x10] sm:$0xff]
    %v16 = vld [vmem:[%s0 + $0x18] sm:$0xff]
    %v17 = vld [vmem:[%s0 + $0x20] sm:$0xff]
    %v18 = vld [vmem:[%s0 + $0x28] sm:$0xff]
    %v19 = vld [vmem:[%s0 + $0x30] sm:$0xff]
    %v20 = vld [vmem:[%s0 + $0x38] sm:$0xff]
    %v21 = vld [vmem:[%s0 + $0x40] sm:$0xff]
    %v22 = vld [vmem:[%s0 + $0x48] sm:$0xff]
    %v23 = vld [vmem:[%s0 + $0x50] sm:$0xff]
    %v24 = vld [vmem:[%s0 + $0x58] sm:$0xff]
    %v25 = vld [vmem:[%s0 + $0x60] sm:$0xff]
    %v26 = vld [vmem:[%s0 + $0x68] sm:$0xff]
    %v27 = vld [vmem:[%s0 + $0x70] sm:$0xff]
    %v28 = vld [vmem:[%s0 + $0x78] sm:$0xff]
    %v29 = vld [vmem:[%s0 + $0x80] sm:$0xff]
    %v30 = vld [vmem:[%s0 + $0x88] sm:$0xff]
    %v31 = vld [vmem:[%s0 + $0x90] sm:$0xff]
    %v32 = vld [vmem:[%s0 + $0x98] sm:$0xff]
    %v33 = vld [vmem:[%s0 + $0xa0] sm:$0xff]
    %v34 = vld [vmem:[%s0 + $0xa8] sm:$0xff]
    %v35 = vld [vmem:[%s0 + $0xb0] sm:$0xff]
    %v36 = vld [vmem:[%s0 + $0xb8] sm:$0xff]
    %v37 = vld [vmem:[%s0 + $0xc0] sm:$0xff]
    %v38 = vld [vmem:[%s0 + $0xc8] sm:$0xff]
    %v39 = vld [vmem:[%s0 + $0xd0] sm:$0xff]
    %v40 = vld [vmem:[%s0 + $0xd8] sm:$0xff]
    %v41 = vld [vmem:[%s0 + $0xe0] sm:$0xff]
    %v42 = vld [vmem:[%s0 + $0xe8] sm:$0xff]
    %v43 = vld [vmem:[%s0 + $0xf0] sm:$0xff]
    %v44 = vld [vmem:[%s0 + $0xf8] sm:$0xff]
    %v45 = vld [vmem:[%s0 + $0x100] sm:$0xff]
    %v46 = vld [vmem:[%s0 + $0x108] sm:$0xff]
    %v47 = vld [vmem:[%s0 + $0x110] sm:$0xff]
    %v48 = vld [vmem:[%s0 + $0x118] sm:$0xff]
    %v49 = vld [vmem:[%s0 + $0x120] sm:$0xff]
    %v50 = vld [vmem:[%s0 + $0x128] sm:$0xff]
    %v51 = vld [vmem:[%s0 + $0x130] sm:$0xff]
    %v52 = vld [vmem:[%s0 + $0x138] sm:$0xff]
    %v53 = vld [vmem:[%s0 + $0x140] sm:$0xff]
    %v54 = vld [vmem:[%s0 + $0x148] sm:$0xff]
    %v55 = vld [vmem:[%s0 + $0x150] sm:$0xff]
    %v56 = vld [vmem:[%s0 + $0x158] sm:$0xff]
    %v57 = vld [vmem:[%s0 + $0x160] sm:$0xff]
    %v58 = vld [vmem:[%s0 + $0x168] sm:$0xff]
    %v59 = vld [vmem:[%s0 + $0x170] sm:$0xff]
    %v60 = vld [vmem:[%s0 + $0x178] sm:$0xff]
    %v61 = vld [vmem:[%s0 + $0x180] sm:$0xff]
    %v62 = vld [vmem:[%s0 + $0x188] sm:$0xff]
    %v63 = vld [vmem:[%s0 + $0x190] sm:$0xff]
    %v64 = vld [vmem:[%s0 + $0x198] sm:$0xff]
    %v65 = vld [vmem:[%s0 + $0x1a0] sm:$0xff]
    %v66 = vld [vmem:[%s0 + $0x1a8] sm:$0xff]
    %v67 = vld [vmem:[%s0 + $0x1b0] sm:$0xff]
    %v68 = vld [vmem:[%s0 + $0x1b8] sm:$0xff]
    %v69 = vld [vmem:[%s0 + $0x1c0] sm:$0xff]
    %v70 = vld [vmem:[%s0 + $0x1c8] sm:$0xff]
    %v71 = vld [vmem:[%s0 + $0x1d0] sm:$0xff]
    %v72 = vld [vmem:[%s0 + $0x1d8] sm:$0xff]
    %v73 = vld [vmem:[%s0 + $0x1e0] sm:$0xff]
    %v74 = vld [vmem:[%s0 + $0x1e8] sm:$0xff]
    %v75 = vld [vmem:[%s0 + $0x1f0] sm:$0xff]
    %v76 = vld [vmem:[%s0 + $0x1f8] sm:$0xff]
    %v77 = vld [vmem:[%s1] sm:$0xf]
    %v78 = vld [vmem:[%s1 + $0x4] sm:$0xf]
    %v79 = vld [vmem:[%s1 + $0x8] sm:$0xf]
    %v80 = vld [vmem:[%s1 + $0xc] sm:$0xf]
    %v81 = vld [vmem:[%s1 + $0x10] sm:$0xf]
    %v82 = vld [vmem:[%s1 + $0x14] sm:$0xf]
    %v83 = vld [vmem:[%s1 + $0x18] sm:$0xf]
    %v84 = vld [vmem:[%s1 + $0x1c] sm:$0xf]
    %v85 = vld [vmem:[%s1 + $0x20] sm:$0xf]
    %v86 = vld [vmem:[%s1 + $0x24] sm:$0xf]
    %v87 = vld [vmem:[%s1 + $0x28] sm:$0xf]
    %v88 = vld [vmem:[%s1 + $0x2c] sm:$0xf]
    %v89 = vld [vmem:[%s1 + $0x30] sm:$0xf]
    %v90 = vld [vmem:[%s1 + $0x34] sm:$0xf]
    %v91 = vld [vmem:[%s1 + $0x38] sm:$0xf]
    %v92 = vld [vmem:[%s1 + $0x3c] sm:$0xf]
    %v93 = vld [vmem:[%s1 + $0x40] sm:$0xf]
    %v94 = vld [vmem:[%s1 + $0x44] sm:$0xf]
    %v95 = vld [vmem:[%s1 + $0x48] sm:$0xf]
    %v96 = vld [vmem:[%s1 + $0x4c] sm:$0xf]
    %v97 = vld [vmem:[%s1 + $0x50] sm:$0xf]
    %v98 = vld [vmem:[%s1 + $0x54] sm:$0xf]
    %v99 = vld [vmem:[%s1 + $0x58] sm:$0xf]
    %v100 = vld [vmem:[%s1 + $0x5c] sm:$0xf]
    %v165 = vunpack.c.l.b16 %v13
    %v166 = vunpack.c.h.b16 %v13
    %v167 = vunpack.c.l.b16 %v14
    %v168 = vunpack.c.h.b16 %v14
    %v169 = vunpack.c.l.b16 %v15
    %v170 = vunpack.c.h.b16 %v15
    %v171 = vunpack.c.l.b16 %v16
    %v172 = vunpack.c.h.b16 %v16
    %v173 = vunpack.c.l.b16 %v17
    %v174 = vunpack.c.h.b16 %v17
    %v175 = vunpack.c.l.b16 %v18
    %v176 = vunpack.c.h.b16 %v18
    %v177 = vunpack.c.l.b16 %v19
    %v178 = vunpack.c.h.b16 %v19
    %v179 = vunpack.c.l.b16 %v20
    %v180 = vunpack.c.h.b16 %v20
    %v181 = vunpack.c.l.b16 %v21
    %v182 = vunpack.c.h.b16 %v21
    %v183 = vunpack.c.l.b16 %v22
    %v184 = vunpack.c.h.b16 %v22
    %v185 = vunpack.c.l.b16 %v23
    %v186 = vunpack.c.h.b16 %v23
    %v187 = vunpack.c.l.b16 %v24
    %v188 = vunpack.c.h.b16 %v24
    %v189 = vunpack.c.l.b16 %v25
    %v190 = vunpack.c.h.b16 %v25
    %v191 = vunpack.c.l.b16 %v26
    %v192 = vunpack.c.h.b16 %v26
    %v193 = vunpack.c.l.b16 %v27
    %v194 = vunpack.c.h.b16 %v27
    %v195 = vunpack.c.l.b16 %v28
    %v196 = vunpack.c.h.b16 %v28
    %v197 = vunpack.c.l.b16 %v29
    %v198 = vunpack.c.h.b16 %v29
    %v199 = vunpack.c.l.b16 %v30
    %v200 = vunpack.c.h.b16 %v30
    %v201 = vunpack.c.l.b16 %v31
    %v202 = vunpack.c.h.b16 %v31
    %v203 = vunpack.c.l.b16 %v32
    %v204 = vunpack.c.h.b16 %v32
    %v205 = vunpack.c.l.b16 %v33
    %v206 = vunpack.c.h.b16 %v33
    %v207 = vunpack.c.l.b16 %v34
    %v208 = vunpack.c.h.b16 %v34
    %v209 = vunpack.c.l.b16 %v35
    %v210 = vunpack.c.h.b16 %v35
    %v211 = vunpack.c.l.b16 %v36
    %v212 = vunpack.c.h.b16 %v36
    %v213 = vunpack.c.l.b16 %v37
    %v214 = vunpack.c.h.b16 %v37
    %v215 = vunpack.c.l.b16 %v38
    %v216 = vunpack.c.h.b16 %v38
    %v217 = vunpack.c.l.b16 %v39
    %v218 = vunpack.c.h.b16 %v39
    %v219 = vunpack.c.l.b16 %v40
    %v220 = vunpack.c.h.b16 %v40
    %v221 = vunpack.c.l.b16 %v41
    %v222 = vunpack.c.h.b16 %v41
    %v223 = vunpack.c.l.b16 %v42
    %v224 = vunpack.c.h.b16 %v42
    %v225 = vunpack.c.l.b16 %v43
    %v226 = vunpack.c.h.b16 %v43
    %v227 = vunpack.c.l.b16 %v44
    %v228 = vunpack.c.h.b16 %v44
    %v229 = vunpack.c.l.b16 %v45
    %v230 = vunpack.c.h.b16 %v45
    %v231 = vunpack.c.l.b16 %v46
    %v232 = vunpack.c.h.b16 %v46
    %v233 = vunpack.c.l.b16 %v47
    %v234 = vunpack.c.h.b16 %v47
    %v235 = vunpack.c.l.b16 %v48
    %v236 = vunpack.c.h.b16 %v48
    %v237 = vunpack.c.l.b16 %v49
    %v238 = vunpack.c.h.b16 %v49
    %v239 = vunpack.c.l.b16 %v50
    %v240 = vunpack.c.h.b16 %v50
    %v241 = vunpack.c.l.b16 %v51
    %v242 = vunpack.c.h.b16 %v51
    %v243 = vunpack.c.l.b16 %v52
    %v244 = vunpack.c.h.b16 %v52
    %v245 = vunpack.c.l.b16 %v53
    %v246 = vunpack.c.h.b16 %v53
    %v247 = vunpack.c.l.b16 %v54
    %v248 = vunpack.c.h.b16 %v54
    %v249 = vunpack.c.l.b16 %v55
    %v250 = vunpack.c.h.b16 %v55
    %v251 = vunpack.c.l.b16 %v56
    %v252 = vunpack.c.h.b16 %v56
    %v253 = vunpack.c.l.b16 %v57
    %v254 = vunpack.c.h.b16 %v57
    %v255 = vunpack.c.l.b16 %v58
    %v256 = vunpack.c.h.b16 %v58
    %v257 = vunpack.c.l.b16 %v59
    %v258 = vunpack.c.h.b16 %v59
    %v259 = vunpack.c.l.b16 %v60
    %v260 = vunpack.c.h.b16 %v60
    %v261 = vunpack.c.l.b16 %v61
    %v262 = vunpack.c.h.b16 %v61
    %v263 = vunpack.c.l.b16 %v62
    %v264 = vunpack.c.h.b16 %v62
    %v265 = vunpack.c.l.b16 %v63
    %v266 = vunpack.c.h.b16 %v63
    %v267 = vunpack.c.l.b16 %v64
    %v268 = vunpack.c.h.b16 %v64
    %v269 = vunpack.c.l.b16 %v65
    %v270 = vunpack.c.h.b16 %v65
    %v271 = vunpack.c.l.b16 %v66
    %v272 = vunpack.c.h.b16 %v66
    %v273 = vunpack.c.l.b16 %v67
    %v274 = vunpack.c.h.b16 %v67
    %v275 = vunpack.c.l.b16 %v68
    %v276 = vunpack.c.h.b16 %v68
    %v277 = vunpack.c.l.b16 %v69
    %v278 = vunpack.c.h.b16 %v69
    %v279 = vunpack.c.l.b16 %v70
    %v280 = vunpack.c.h.b16 %v70
    %v281 = vunpack.c.l.b16 %v71
    %v282 = vunpack.c.h.b16 %v71
    %v283 = vunpack.c.l.b16 %v72
    %v284 = vunpack.c.h.b16 %v72
    %v285 = vunpack.c.l.b16 %v73
    %v286 = vunpack.c.h.b16 %v73
    %v287 = vunpack.c.l.b16 %v74
    %v288 = vunpack.c.h.b16 %v74
    %v289 = vunpack.c.l.b16 %v75
    %v290 = vunpack.c.h.b16 %v75
    %v291 = vunpack.c.l.b16 %v76
    %v292 = vunpack.c.h.b16 %v76
    %v293 = vpack.c.b16 %v167, %v165
    %v294 = vpack.c.b16 %v168, %v166
    %v295 = vpack.c.b16 %v171, %v169
    %v296 = vpack.c.b16 %v172, %v170
    %v297 = vpack.c.b16 %v175, %v173
    %v298 = vpack.c.b16 %v176, %v174
    %v299 = vpack.c.b16 %v179, %v177
    %v300 = vpack.c.b16 %v180, %v178
    %v301 = vpack.c.b16 %v183, %v181
    %v302 = vpack.c.b16 %v184, %v182
    %v303 = vpack.c.b16 %v187, %v185
    %v304 = vpack.c.b16 %v188, %v186
    %v305 = vpack.c.b16 %v191, %v189
    %v306 = vpack.c.b16 %v192, %v190
    %v307 = vpack.c.b16 %v195, %v193
    %v308 = vpack.c.b16 %v196, %v194
    %v309 = vpack.c.b16 %v199, %v197
    %v310 = vpack.c.b16 %v200, %v198
    %v311 = vpack.c.b16 %v203, %v201
    %v312 = vpack.c.b16 %v204, %v202
    %v313 = vpack.c.b16 %v207, %v205
    %v314 = vpack.c.b16 %v208, %v206
    %v315 = vpack.c.b16 %v211, %v209
    %v316 = vpack.c.b16 %v212, %v210
    %v317 = vpack.c.b16 %v215, %v213
    %v318 = vpack.c.b16 %v216, %v214
    %v319 = vpack.c.b16 %v219, %v217
    %v320 = vpack.c.b16 %v220, %v218
    %v321 = vpack.c.b16 %v223, %v221
    %v322 = vpack.c.b16 %v224, %v222
    %v323 = vpack.c.b16 %v227, %v225
    %v324 = vpack.c.b16 %v228, %v226
    %v325 = vpack.c.b16 %v231, %v229
    %v326 = vpack.c.b16 %v232, %v230
    %v327 = vpack.c.b16 %v235, %v233
    %v328 = vpack.c.b16 %v236, %v234
    %v329 = vpack.c.b16 %v239, %v237
    %v330 = vpack.c.b16 %v240, %v238
    %v331 = vpack.c.b16 %v243, %v241
    %v332 = vpack.c.b16 %v244, %v242
    %v333 = vpack.c.b16 %v247, %v245
    %v334 = vpack.c.b16 %v248, %v246
    %v335 = vpack.c.b16 %v251, %v249
    %v336 = vpack.c.b16 %v252, %v250
    %v337 = vpack.c.b16 %v255, %v253
    %v338 = vpack.c.b16 %v256, %v254
    %v339 = vpack.c.b16 %v259, %v257
    %v340 = vpack.c.b16 %v260, %v258
    %v341 = vpack.c.b16 %v263, %v261
    %v342 = vpack.c.b16 %v264, %v262
    %v343 = vpack.c.b16 %v267, %v265
    %v344 = vpack.c.b16 %v268, %v266
    %v345 = vpack.c.b16 %v271, %v269
    %v346 = vpack.c.b16 %v272, %v270
    %v347 = vpack.c.b16 %v275, %v273
    %v348 = vpack.c.b16 %v276, %v274
    %v349 = vpack.c.b16 %v279, %v277
    %v350 = vpack.c.b16 %v280, %v278
    %v351 = vpack.c.b16 %v283, %v281
    %v352 = vpack.c.b16 %v284, %v282
    %v353 = vpack.c.b16 %v287, %v285
    %v354 = vpack.c.b16 %v288, %v286
    %v355 = vpack.c.b16 %v291, %v289
    %v356 = vpack.c.b16 %v292, %v290
    %v413 = vunpack.c.l.b16 %v77
    %v414 = vunpack.c.l.b16 %v78
    %v415 = vunpack.c.l.b16 %v79
    %v416 = vunpack.c.l.b16 %v80
    %v417 = vunpack.c.l.b16 %v81
    %v418 = vunpack.c.l.b16 %v82
    %v419 = vunpack.c.l.b16 %v83
    %v420 = vunpack.c.l.b16 %v84
    %v421 = vunpack.c.l.b16 %v85
    %v422 = vunpack.c.l.b16 %v86
    %v423 = vunpack.c.l.b16 %v87
    %v424 = vunpack.c.l.b16 %v88
    %v425 = vunpack.c.l.b16 %v89
    %v426 = vunpack.c.l.b16 %v90
    %v427 = vunpack.c.l.b16 %v91
    %v428 = vunpack.c.l.b16 %v92
    %v429 = vunpack.c.l.b16 %v93
    %v430 = vunpack.c.l.b16 %v94
    %v431 = vunpack.c.l.b16 %v95
    %v432 = vunpack.c.l.b16 %v96
    %v433 = vunpack.c.l.b16 %v97
    %v434 = vunpack.c.l.b16 %v98
    %v435 = vunpack.c.l.b16 %v99
    %v436 = vunpack.c.l.b16 %v100
    %v437 = vpack.c.b16 %v414, %v413
    %v438 = vpack.c.b16 %v416, %v415
    %v439 = vpack.c.b16 %v418, %v417
    %v440 = vpack.c.b16 %v420, %v419
    %v441 = vpack.c.b16 %v422, %v421
    %v442 = vpack.c.b16 %v424, %v423
    %v443 = vpack.c.b16 %v426, %v425
    %v444 = vpack.c.b16 %v428, %v427
    %v445 = vpack.c.b16 %v430, %v429
    %v446 = vpack.c.b16 %v432, %v431
    %v447 = vpack.c.b16 %v434, %v433
    %v448 = vpack.c.b16 %v436, %v435
    %vm461 = vcmask 523264
    %v463 = vsel %vm461, %v294, 0
    %v466 = vsel %vm461, %v296, 0
    %v469 = vsel %vm461, %v298, 0
    %v472 = vsel %vm461, %v300, 0
    %v475 = vsel %vm461, %v302, 0
    %v478 = vsel %vm461, %v304, 0
    %v481 = vsel %vm461, %v306, 0
    %v484 = vsel %vm461, %v308, 0
    %v487 = vsel %vm461, %v310, 0
    %v490 = vsel %vm461, %v312, 0
    %v493 = vsel %vm461, %v314, 0
    %v496 = vsel %vm461, %v316, 0
    %v499 = vsel %vm461, %v318, 0
    %v502 = vsel %vm461, %v320, 0
    %v505 = vsel %vm461, %v322, 0
    %v508 = vsel %vm461, %v324, 0
    %v511 = vsel %vm461, %v326, 0
    %v514 = vsel %vm461, %v328, 0
    %v517 = vsel %vm461, %v330, 0
    %v520 = vsel %vm461, %v332, 0
    %v523 = vsel %vm461, %v334, 0
    %v526 = vsel %vm461, %v336, 0
    %v529 = vsel %vm461, %v338, 0
    %v532 = vsel %vm461, %v340, 0
    %v535 = vsel %vm461, %v342, 0
    %v538 = vsel %vm461, %v344, 0
    %v541 = vsel %vm461, %v346, 0
    %v544 = vsel %vm461, %v348, 0
    %v547 = vsel %vm461, %v350, 0
    %v550 = vsel %vm461, %v352, 0
    %v553 = vsel %vm461, %v354, 0
    %v556 = vsel %vm461, %v356, 0
    %558 = vmatpush.bf16.msra.mxu0 %v444
    %559 = vmatpush.bf16.msra.mxu0 %v443
    %560 = vmatpush.bf16.msra.mxu0 %v442
    %561 = vmatpush.bf16.msra.mxu0 %v441
    %562 = vmatpush.bf16.msra.mxu0 %v440
    %563 = vmatpush.bf16.msra.mxu0 %v439
    %564 = vmatpush.bf16.msra.mxu0 %v438
    %565 = vmatpush.bf16.msra.mxu0 %v437
    %566 = vmatmul.bf16.gmra.mxu0 %v293
    %v567 = vpop.f32.mrf.mxu0
    %v568 = vadd.f32 0.0, %v567
    %v569 = vpop.f32.mrf.mxu0
    %v570 = vadd.f32 0.0, %v569
    %571 = vmatmul.bf16.gmra.mxu0 %v295
    %v572 = vpop.f32.mrf.mxu0
    %v573 = vadd.f32 0.0, %v572
    %v574 = vpop.f32.mrf.mxu0
    %v575 = vadd.f32 0.0, %v574
    %576 = vmatmul.bf16.gmra.mxu0 %v297
    %v577 = vpop.f32.mrf.mxu0
    %v578 = vadd.f32 0.0, %v577
    %v579 = vpop.f32.mrf.mxu0
    %v580 = vadd.f32 0.0, %v579
    %581 = vmatmul.bf16.gmra.mxu0 %v299
    %v582 = vpop.f32.mrf.mxu0
    %v583 = vadd.f32 0.0, %v582
    %v584 = vpop.f32.mrf.mxu0
    %v585 = vadd.f32 0.0, %v584
    %586 = vmatmul.bf16.gmra.mxu0 %v301
    %v587 = vpop.f32.mrf.mxu0
    %v588 = vadd.f32 0.0, %v587
    %v589 = vpop.f32.mrf.mxu0
    %v590 = vadd.f32 0.0, %v589
    %591 = vmatmul.bf16.gmra.mxu0 %v303
    %v592 = vpop.f32.mrf.mxu0
    %v593 = vadd.f32 0.0, %v592
    %v594 = vpop.f32.mrf.mxu0
    %v595 = vadd.f32 0.0, %v594
    %596 = vmatmul.bf16.gmra.mxu0 %v305
    %v597 = vpop.f32.mrf.mxu0
    %v598 = vadd.f32 0.0, %v597
    %v599 = vpop.f32.mrf.mxu0
    %v600 = vadd.f32 0.0, %v599
    %601 = vmatmul.bf16.gmra.mxu0 %v307
    %v602 = vpop.f32.mrf.mxu0
    %v603 = vadd.f32 0.0, %v602
    %v604 = vpop.f32.mrf.mxu0
    %v605 = vadd.f32 0.0, %v604
    %606 = vmatmul.bf16.gmra.mxu0 %v309
    %v607 = vpop.f32.mrf.mxu0
    %v608 = vadd.f32 0.0, %v607
    %v609 = vpop.f32.mrf.mxu0
    %v610 = vadd.f32 0.0, %v609
    %611 = vmatmul.bf16.gmra.mxu0 %v311
    %v612 = vpop.f32.mrf.mxu0
    %v613 = vadd.f32 0.0, %v612
    %v614 = vpop.f32.mrf.mxu0
    %v615 = vadd.f32 0.0, %v614
    %616 = vmatmul.bf16.gmra.mxu0 %v313
    %v617 = vpop.f32.mrf.mxu0
    %v618 = vadd.f32 0.0, %v617
    %v619 = vpop.f32.mrf.mxu0
    %v620 = vadd.f32 0.0, %v619
    %621 = vmatmul.bf16.gmra.mxu0 %v315
    %v622 = vpop.f32.mrf.mxu0
    %v623 = vadd.f32 0.0, %v622
    %v624 = vpop.f32.mrf.mxu0
    %v625 = vadd.f32 0.0, %v624
    %626 = vmatmul.bf16.gmra.mxu0 %v317
    %v627 = vpop.f32.mrf.mxu0
    %v628 = vadd.f32 0.0, %v627
    %v629 = vpop.f32.mrf.mxu0
    %v630 = vadd.f32 0.0, %v629
    %631 = vmatmul.bf16.gmra.mxu0 %v319
    %v632 = vpop.f32.mrf.mxu0
    %v633 = vadd.f32 0.0, %v632
    %v634 = vpop.f32.mrf.mxu0
    %v635 = vadd.f32 0.0, %v634
    %636 = vmatmul.bf16.gmra.mxu0 %v321
    %v637 = vpop.f32.mrf.mxu0
    %v638 = vadd.f32 0.0, %v637
    %v639 = vpop.f32.mrf.mxu0
    %v640 = vadd.f32 0.0, %v639
    %641 = vmatmul.bf16.gmra.mxu0 %v323
    %v642 = vpop.f32.mrf.mxu0
    %v643 = vadd.f32 0.0, %v642
    %v644 = vpop.f32.mrf.mxu0
    %v645 = vadd.f32 0.0, %v644
    %646 = vmatmul.bf16.gmra.mxu0 %v325
    %v647 = vpop.f32.mrf.mxu0
    %v648 = vadd.f32 0.0, %v647
    %v649 = vpop.f32.mrf.mxu0
    %v650 = vadd.f32 0.0, %v649
    %651 = vmatmul.bf16.gmra.mxu0 %v327
    %v652 = vpop.f32.mrf.mxu0
    %v653 = vadd.f32 0.0, %v652
    %v654 = vpop.f32.mrf.mxu0
    %v655 = vadd.f32 0.0, %v654
    %656 = vmatmul.bf16.gmra.mxu0 %v329
    %v657 = vpop.f32.mrf.mxu0
    %v658 = vadd.f32 0.0, %v657
    %v659 = vpop.f32.mrf.mxu0
    %v660 = vadd.f32 0.0, %v659
    %661 = vmatmul.bf16.gmra.mxu0 %v331
    %v662 = vpop.f32.mrf.mxu0
    %v663 = vadd.f32 0.0, %v662
    %v664 = vpop.f32.mrf.mxu0
    %v665 = vadd.f32 0.0, %v664
    %666 = vmatmul.bf16.gmra.mxu0 %v333
    %v667 = vpop.f32.mrf.mxu0
    %v668 = vadd.f32 0.0, %v667
    %v669 = vpop.f32.mrf.mxu0
    %v670 = vadd.f32 0.0, %v669
    %671 = vmatmul.bf16.gmra.mxu0 %v335
    %v672 = vpop.f32.mrf.mxu0
    %v673 = vadd.f32 0.0, %v672
    %v674 = vpop.f32.mrf.mxu0
    %v675 = vadd.f32 0.0, %v674
    %676 = vmatmul.bf16.gmra.mxu0 %v337
    %v677 = vpop.f32.mrf.mxu0
    %v678 = vadd.f32 0.0, %v677
    %v679 = vpop.f32.mrf.mxu0
    %v680 = vadd.f32 0.0, %v679
    %681 = vmatmul.bf16.gmra.mxu0 %v339
    %v682 = vpop.f32.mrf.mxu0
    %v683 = vadd.f32 0.0, %v682
    %v684 = vpop.f32.mrf.mxu0
    %v685 = vadd.f32 0.0, %v684
    %686 = vmatmul.bf16.gmra.mxu0 %v341
    %v687 = vpop.f32.mrf.mxu0
    %v688 = vadd.f32 0.0, %v687
    %v689 = vpop.f32.mrf.mxu0
    %v690 = vadd.f32 0.0, %v689
    %691 = vmatmul.bf16.gmra.mxu0 %v343
    %v692 = vpop.f32.mrf.mxu0
    %v693 = vadd.f32 0.0, %v692
    %v694 = vpop.f32.mrf.mxu0
    %v695 = vadd.f32 0.0, %v694
    %696 = vmatmul.bf16.gmra.mxu0 %v345
    %v697 = vpop.f32.mrf.mxu0
    %v698 = vadd.f32 0.0, %v697
    %v699 = vpop.f32.mrf.mxu0
    %v700 = vadd.f32 0.0, %v699
    %701 = vmatmul.bf16.gmra.mxu0 %v347
    %v702 = vpop.f32.mrf.mxu0
    %v703 = vadd.f32 0.0, %v702
    %v704 = vpop.f32.mrf.mxu0
    %v705 = vadd.f32 0.0, %v704
    %706 = vmatmul.bf16.gmra.mxu0 %v349
    %v707 = vpop.f32.mrf.mxu0
    %v708 = vadd.f32 0.0, %v707
    %v709 = vpop.f32.mrf.mxu0
    %v710 = vadd.f32 0.0, %v709
    %711 = vmatmul.bf16.gmra.mxu0 %v351
    %v712 = vpop.f32.mrf.mxu0
    %v713 = vadd.f32 0.0, %v712
    %v714 = vpop.f32.mrf.mxu0
    %v715 = vadd.f32 0.0, %v714
    %716 = vmatmul.bf16.gmra.mxu0 %v353
    %v717 = vpop.f32.mrf.mxu0
    %v718 = vadd.f32 0.0, %v717
    %v719 = vpop.f32.mrf.mxu0
    %v720 = vadd.f32 0.0, %v719
    %721 = vmatmul.bf16.gmra.mxu0 %v355
    %v722 = vpop.f32.mrf.mxu0
    %v723 = vadd.f32 0.0, %v722
    %v724 = vpop.f32.mrf.mxu0
    %v725 = vadd.f32 0.0, %v724
    %726 = vdwg.mxu0
    %727 = vmatpush.bf16.msra.mxu0 0
    %728 = vmatpush.bf16.msra.mxu0 0
    %729 = vmatpush.bf16.msra.mxu0 0
    %730 = vmatpush.bf16.msra.mxu0 0
    %731 = vmatpush.bf16.msra.mxu0 %v448
    %732 = vmatpush.bf16.msra.mxu0 %v447
    %733 = vmatpush.bf16.msra.mxu0 %v446
    %734 = vmatpush.bf16.msra.mxu0 %v445
    %735 = vmatmul.bf16.gmra.mxu0 %v463
    %v736 = vpop.f32.mrf.mxu0
    %v737 = vadd.f32 %v568, %v736
    %v738 = vpop.f32.mrf.mxu0
    %v739 = vadd.f32 %v570, %v738
    %740 = vmatmul.bf16.gmra.mxu0 %v466
    %v741 = vpop.f32.mrf.mxu0
    %v742 = vadd.f32 %v573, %v741
    %v743 = vpop.f32.mrf.mxu0
    %v744 = vadd.f32 %v575, %v743
    %745 = vmatmul.bf16.gmra.mxu0 %v469
    %v746 = vpop.f32.mrf.mxu0
    %v747 = vadd.f32 %v578, %v746
    %v748 = vpop.f32.mrf.mxu0
    %v749 = vadd.f32 %v580, %v748
    %750 = vmatmul.bf16.gmra.mxu0 %v472
    %v751 = vpop.f32.mrf.mxu0
    %v752 = vadd.f32 %v583, %v751
    %v753 = vpop.f32.mrf.mxu0
    %v754 = vadd.f32 %v585, %v753
    %755 = vmatmul.bf16.gmra.mxu0 %v475
    %v756 = vpop.f32.mrf.mxu0
    %v757 = vadd.f32 %v588, %v756
    %v758 = vpop.f32.mrf.mxu0
    %v759 = vadd.f32 %v590, %v758
    %760 = vmatmul.bf16.gmra.mxu0 %v478
    %v761 = vpop.f32.mrf.mxu0
    %v762 = vadd.f32 %v593, %v761
    %v763 = vpop.f32.mrf.mxu0
    %v764 = vadd.f32 %v595, %v763
    %765 = vmatmul.bf16.gmra.mxu0 %v481
    %v766 = vpop.f32.mrf.mxu0
    %v767 = vadd.f32 %v598, %v766
    %v768 = vpop.f32.mrf.mxu0
    %v769 = vadd.f32 %v600, %v768
    %770 = vmatmul.bf16.gmra.mxu0 %v484
    %v771 = vpop.f32.mrf.mxu0
    %v772 = vadd.f32 %v603, %v771
    %v773 = vpop.f32.mrf.mxu0
    %v774 = vadd.f32 %v605, %v773
    %775 = vmatmul.bf16.gmra.mxu0 %v487
    %v776 = vpop.f32.mrf.mxu0
    %v777 = vadd.f32 %v608, %v776
    %v778 = vpop.f32.mrf.mxu0
    %v779 = vadd.f32 %v610, %v778
    %780 = vmatmul.bf16.gmra.mxu0 %v490
    %v781 = vpop.f32.mrf.mxu0
    %v782 = vadd.f32 %v613, %v781
    %v783 = vpop.f32.mrf.mxu0
    %v784 = vadd.f32 %v615, %v783
    %785 = vmatmul.bf16.gmra.mxu0 %v493
    %v786 = vpop.f32.mrf.mxu0
    %v787 = vadd.f32 %v618, %v786
    %v788 = vpop.f32.mrf.mxu0
    %v789 = vadd.f32 %v620, %v788
    %790 = vmatmul.bf16.gmra.mxu0 %v496
    %v791 = vpop.f32.mrf.mxu0
    %v792 = vadd.f32 %v623, %v791
    %v793 = vpop.f32.mrf.mxu0
    %v794 = vadd.f32 %v625, %v793
    %795 = vmatmul.bf16.gmra.mxu0 %v499
    %v796 = vpop.f32.mrf.mxu0
    %v797 = vadd.f32 %v628, %v796
    %v798 = vpop.f32.mrf.mxu0
    %v799 = vadd.f32 %v630, %v798
    %800 = vmatmul.bf16.gmra.mxu0 %v502
    %v801 = vpop.f32.mrf.mxu0
    %v802 = vadd.f32 %v633, %v801
    %v803 = vpop.f32.mrf.mxu0
    %v804 = vadd.f32 %v635, %v803
    %805 = vmatmul.bf16.gmra.mxu0 %v505
    %v806 = vpop.f32.mrf.mxu0
    %v807 = vadd.f32 %v638, %v806
    %v808 = vpop.f32.mrf.mxu0
    %v809 = vadd.f32 %v640, %v808
    %810 = vmatmul.bf16.gmra.mxu0 %v508
    %v811 = vpop.f32.mrf.mxu0
    %v812 = vadd.f32 %v643, %v811
    %v813 = vpop.f32.mrf.mxu0
    %v814 = vadd.f32 %v645, %v813
    %815 = vmatmul.bf16.gmra.mxu0 %v511
    %v816 = vpop.f32.mrf.mxu0
    %v817 = vadd.f32 %v648, %v816
    %v818 = vpop.f32.mrf.mxu0
    %v819 = vadd.f32 %v650, %v818
    %820 = vmatmul.bf16.gmra.mxu0 %v514
    %v821 = vpop.f32.mrf.mxu0
    %v822 = vadd.f32 %v653, %v821
    %v823 = vpop.f32.mrf.mxu0
    %v824 = vadd.f32 %v655, %v823
    %825 = vmatmul.bf16.gmra.mxu0 %v517
    %v826 = vpop.f32.mrf.mxu0
    %v827 = vadd.f32 %v658, %v826
    %v828 = vpop.f32.mrf.mxu0
    %v829 = vadd.f32 %v660, %v828
    %830 = vmatmul.bf16.gmra.mxu0 %v520
    %v831 = vpop.f32.mrf.mxu0
    %v832 = vadd.f32 %v663, %v831
    %v833 = vpop.f32.mrf.mxu0
    %v834 = vadd.f32 %v665, %v833
    %835 = vmatmul.bf16.gmra.mxu0 %v523
    %v836 = vpop.f32.mrf.mxu0
    %v837 = vadd.f32 %v668, %v836
    %v838 = vpop.f32.mrf.mxu0
    %v839 = vadd.f32 %v670, %v838
    %840 = vmatmul.bf16.gmra.mxu0 %v526
    %v841 = vpop.f32.mrf.mxu0
    %v842 = vadd.f32 %v673, %v841
    %v843 = vpop.f32.mrf.mxu0
    %v844 = vadd.f32 %v675, %v843
    %845 = vmatmul.bf16.gmra.mxu0 %v529
    %v846 = vpop.f32.mrf.mxu0
    %v847 = vadd.f32 %v678, %v846
    %v848 = vpop.f32.mrf.mxu0
    %v849 = vadd.f32 %v680, %v848
    %850 = vmatmul.bf16.gmra.mxu0 %v532
    %v851 = vpop.f32.mrf.mxu0
    %v852 = vadd.f32 %v683, %v851
    %v853 = vpop.f32.mrf.mxu0
    %v854 = vadd.f32 %v685, %v853
    %855 = vmatmul.bf16.gmra.mxu0 %v535
    %v856 = vpop.f32.mrf.mxu0
    %v857 = vadd.f32 %v688, %v856
    %v858 = vpop.f32.mrf.mxu0
    %v859 = vadd.f32 %v690, %v858
    %860 = vmatmul.bf16.gmra.mxu0 %v538
    %v861 = vpop.f32.mrf.mxu0
    %v862 = vadd.f32 %v693, %v861
    %v863 = vpop.f32.mrf.mxu0
    %v864 = vadd.f32 %v695, %v863
    %865 = vmatmul.bf16.gmra.mxu0 %v541
    %v866 = vpop.f32.mrf.mxu0
    %v867 = vadd.f32 %v698, %v866
    %v868 = vpop.f32.mrf.mxu0
    %v869 = vadd.f32 %v700, %v868
    %870 = vmatmul.bf16.gmra.mxu0 %v544
    %v871 = vpop.f32.mrf.mxu0
    %v872 = vadd.f32 %v703, %v871
    %v873 = vpop.f32.mrf.mxu0
    %v874 = vadd.f32 %v705, %v873
    %875 = vmatmul.bf16.gmra.mxu0 %v547
    %v876 = vpop.f32.mrf.mxu0
    %v877 = vadd.f32 %v708, %v876
    %v878 = vpop.f32.mrf.mxu0
    %v879 = vadd.f32 %v710, %v878
    %880 = vmatmul.bf16.gmra.mxu0 %v550
    %v881 = vpop.f32.mrf.mxu0
    %v882 = vadd.f32 %v713, %v881
    %v883 = vpop.f32.mrf.mxu0
    %v884 = vadd.f32 %v715, %v883
    %885 = vmatmul.bf16.gmra.mxu0 %v553
    %v886 = vpop.f32.mrf.mxu0
    %v887 = vadd.f32 %v718, %v886
    %v888 = vpop.f32.mrf.mxu0
    %v889 = vadd.f32 %v720, %v888
    %890 = vmatmul.bf16.gmra.mxu0 %v556
    %v891 = vpop.f32.mrf.mxu0
    %v892 = vadd.f32 %v723, %v891
    %v893 = vpop.f32.mrf.mxu0
    %v894 = vadd.f32 %v725, %v893
    %895 = vdwg.mxu0
    %v896 = vpack.c.bf16 %v737, %v737
    %v897 = vpack.c.bf16 %v739, %v739
    %v898 = vpack.c.bf16 %v742, %v742
    %v899 = vpack.c.bf16 %v744, %v744
    %v900 = vpack.c.bf16 %v747, %v747
    %v901 = vpack.c.bf16 %v749, %v749
    %v902 = vpack.c.bf16 %v752, %v752
    %v903 = vpack.c.bf16 %v754, %v754
    %v904 = vpack.c.bf16 %v757, %v757
    %v905 = vpack.c.bf16 %v759, %v759
    %v906 = vpack.c.bf16 %v762, %v762
    %v907 = vpack.c.bf16 %v764, %v764
    %v908 = vpack.c.bf16 %v767, %v767
    %v909 = vpack.c.bf16 %v769, %v769
    %v910 = vpack.c.bf16 %v772, %v772
    %v911 = vpack.c.bf16 %v774, %v774
    %v912 = vpack.c.bf16 %v777, %v777
    %v913 = vpack.c.bf16 %v779, %v779
    %v914 = vpack.c.bf16 %v782, %v782
    %v915 = vpack.c.bf16 %v784, %v784
    %v916 = vpack.c.bf16 %v787, %v787
    %v917 = vpack.c.bf16 %v789, %v789
    %v918 = vpack.c.bf16 %v792, %v792
    %v919 = vpack.c.bf16 %v794, %v794
    %v920 = vpack.c.bf16 %v797, %v797
    %v921 = vpack.c.bf16 %v799, %v799
    %v922 = vpack.c.bf16 %v802, %v802
    %v923 = vpack.c.bf16 %v804, %v804
    %v924 = vpack.c.bf16 %v807, %v807
    %v925 = vpack.c.bf16 %v809, %v809
    %v926 = vpack.c.bf16 %v812, %v812
    %v927 = vpack.c.bf16 %v814, %v814
    %v928 = vpack.c.bf16 %v817, %v817
    %v929 = vpack.c.bf16 %v819, %v819
    %v930 = vpack.c.bf16 %v822, %v822
    %v931 = vpack.c.bf16 %v824, %v824
    %v932 = vpack.c.bf16 %v827, %v827
    %v933 = vpack.c.bf16 %v829, %v829
    %v934 = vpack.c.bf16 %v832, %v832
    %v935 = vpack.c.bf16 %v834, %v834
    %v936 = vpack.c.bf16 %v837, %v837
    %v937 = vpack.c.bf16 %v839, %v839
    %v938 = vpack.c.bf16 %v842, %v842
    %v939 = vpack.c.bf16 %v844, %v844
    %v940 = vpack.c.bf16 %v847, %v847
    %v941 = vpack.c.bf16 %v849, %v849
    %v942 = vpack.c.bf16 %v852, %v852
    %v943 = vpack.c.bf16 %v854, %v854
    %v944 = vpack.c.bf16 %v857, %v857
    %v945 = vpack.c.bf16 %v859, %v859
    %v946 = vpack.c.bf16 %v862, %v862
    %v947 = vpack.c.bf16 %v864, %v864
    %v948 = vpack.c.bf16 %v867, %v867
    %v949 = vpack.c.bf16 %v869, %v869
    %v950 = vpack.c.bf16 %v872, %v872
    %v951 = vpack.c.bf16 %v874, %v874
    %v952 = vpack.c.bf16 %v877, %v877
    %v953 = vpack.c.bf16 %v879, %v879
    %v954 = vpack.c.bf16 %v882, %v882
    %v955 = vpack.c.bf16 %v884, %v884
    %v956 = vpack.c.bf16 %v887, %v887
    %v957 = vpack.c.bf16 %v889, %v889
    %v958 = vpack.c.bf16 %v892, %v892
    %v959 = vpack.c.bf16 %v894, %v894
    %960 = vst [vmem:[#allocation2] sm:$0xf] %v896
    %961 = vst [vmem:[#allocation2 + $0x4] sm:$0xf] %v897
    %962 = vst [vmem:[#allocation2 + $0x8] sm:$0xf] %v898
    %963 = vst [vmem:[#allocation2 + $0xc] sm:$0xf] %v899
    %964 = vst [vmem:[#allocation2 + $0x10] sm:$0xf] %v900
    %965 = vst [vmem:[#allocation2 + $0x14] sm:$0xf] %v901
    %966 = vst [vmem:[#allocation2 + $0x18] sm:$0xf] %v902
    %967 = vst [vmem:[#allocation2 + $0x1c] sm:$0xf] %v903
    %968 = vst [vmem:[#allocation2 + $0x20] sm:$0xf] %v904
    %969 = vst [vmem:[#allocation2 + $0x24] sm:$0xf] %v905
    %970 = vst [vmem:[#allocation2 + $0x28] sm:$0xf] %v906
    %971 = vst [vmem:[#allocation2 + $0x2c] sm:$0xf] %v907
    %972 = vst [vmem:[#allocation2 + $0x30] sm:$0xf] %v908
    %973 = vst [vmem:[#allocation2 + $0x34] sm:$0xf] %v909
    %974 = vst [vmem:[#allocation2 + $0x38] sm:$0xf] %v910
    %975 = vst [vmem:[#allocation2 + $0x3c] sm:$0xf] %v911
    %976 = vst [vmem:[#allocation2 + $0x40] sm:$0xf] %v912
    %977 = vst [vmem:[#allocation2 + $0x44] sm:$0xf] %v913
    %978 = vst [vmem:[#allocation2 + $0x48] sm:$0xf] %v914
    %979 = vst [vmem:[#allocation2 + $0x4c] sm:$0xf] %v915
    %980 = vst [vmem:[#allocation2 + $0x50] sm:$0xf] %v916
    %981 = vst [vmem:[#allocation2 + $0x54] sm:$0xf] %v917
    %982 = vst [vmem:[#allocation2 + $0x58] sm:$0xf] %v918
    %983 = vst [vmem:[#allocation2 + $0x5c] sm:$0xf] %v919
    %984 = vst [vmem:[#allocation2 + $0x60] sm:$0xf] %v920
    %985 = vst [vmem:[#allocation2 + $0x64] sm:$0xf] %v921
    %986 = vst [vmem:[#allocation2 + $0x68] sm:$0xf] %v922
    %987 = vst [vmem:[#allocation2 + $0x6c] sm:$0xf] %v923
    %988 = vst [vmem:[#allocation2 + $0x70] sm:$0xf] %v924
    %989 = vst [vmem:[#allocation2 + $0x74] sm:$0xf] %v925
    %990 = vst [vmem:[#allocation2 + $0x78] sm:$0xf] %v926
    %991 = vst [vmem:[#allocation2 + $0x7c] sm:$0xf] %v927
    %992 = vst [vmem:[#allocation2 + $0x80] sm:$0xf] %v928
    %993 = vst [vmem:[#allocation2 + $0x84] sm:$0xf] %v929
    %994 = vst [vmem:[#allocation2 + $0x88] sm:$0xf] %v930
    %995 = vst [vmem:[#allocation2 + $0x8c] sm:$0xf] %v931
    %996 = vst [vmem:[#allocation2 + $0x90] sm:$0xf] %v932
    %997 = vst [vmem:[#allocation2 + $0x94] sm:$0xf] %v933
    %998 = vst [vmem:[#allocation2 + $0x98] sm:$0xf] %v934
    %999 = vst [vmem:[#allocation2 + $0x9c] sm:$0xf] %v935
    %1000 = vst [vmem:[#allocation2 + $0xa0] sm:$0xf] %v936
    %1001 = vst [vmem:[#allocation2 + $0xa4] sm:$0xf] %v937
    %1002 = vst [vmem:[#allocation2 + $0xa8] sm:$0xf] %v938
    %1003 = vst [vmem:[#allocation2 + $0xac] sm:$0xf] %v939
    %1004 = vst [vmem:[#allocation2 + $0xb0] sm:$0xf] %v940
    %1005 = vst [vmem:[#allocation2 + $0xb4] sm:$0xf] %v941
    %1006 = vst [vmem:[#allocation2 + $0xb8] sm:$0xf] %v942
    %1007 = vst [vmem:[#allocation2 + $0xbc] sm:$0xf] %v943
    %1008 = vst [vmem:[#allocation2 + $0xc0] sm:$0xf] %v944
    %1009 = vst [vmem:[#allocation2 + $0xc4] sm:$0xf] %v945
    %1010 = vst [vmem:[#allocation2 + $0xc8] sm:$0xf] %v946
    %1011 = vst [vmem:[#allocation2 + $0xcc] sm:$0xf] %v947
    %1012 = vst [vmem:[#allocation2 + $0xd0] sm:$0xf] %v948
    %1013 = vst [vmem:[#allocation2 + $0xd4] sm:$0xf] %v949
    %1014 = vst [vmem:[#allocation2 + $0xd8] sm:$0xf] %v950
    %1015 = vst [vmem:[#allocation2 + $0xdc] sm:$0xf] %v951
    %1016 = vst [vmem:[#allocation2 + $0xe0] sm:$0xf] %v952
    %1017 = vst [vmem:[#allocation2 + $0xe4] sm:$0xf] %v953
    %1018 = vst [vmem:[#allocation2 + $0xe8] sm:$0xf] %v954
    %1019 = vst [vmem:[#allocation2 + $0xec] sm:$0xf] %v955
    %1020 = vst [vmem:[#allocation2 + $0xf0] sm:$0xf] %v956
    %1021 = vst [vmem:[#allocation2 + $0xf4] sm:$0xf] %v957
    %1022 = vst [vmem:[#allocation2 + $0xf8] sm:$0xf] %v958
    %1023 = vst [vmem:[#allocation2 + $0xfc] sm:$0xf] %v959
    // Predicated region
    $region10: #{tpu_custom_call.1} parent=1 // pred_check
      _
    $region11: #{tpu_custom_call.1} parent=1 // pred_check_branch
      %1025 = sbr.rel (0) target = $region13
    $region12: #{tpu_custom_call.1} parent=1 // pred_region
      %1027 = vsyncadd [#allocation3], 0
      %s1028 = sshll.u32 [#allocation2], 4
      %s1029 = int_to_ptr.vmem [resolvable:$true] %s1028
      %s1030 = sshll.u32 %s2, 4
      %s1031 = int_to_ptr.hbm [resolvable:$true] %s1030
      %1036 = dma.vmem_to_hbm [thread:$0]  %s1029, 4096, %s1031, [#allocation3], 64, 64, 4
    $region13: #{tpu_custom_call.1} parent=1 // pred_fallthru
      _
    // Predicated region
    $region14: #{tpu_custom_call.1} parent=1 // pred_check
      _
    $region15: #{tpu_custom_call.1} parent=1 // pred_check_branch
      %1038 = sbr.rel (0) target = $region17
    $region16: #{tpu_custom_call.1} parent=1 // pred_region
      %1040 = dma.done [#allocation3], 4096
    $region17: #{tpu_custom_call.1} parent=1 // pred_fallthru
      _
    %1041 = vsyncpa [#allocation3], 1

</llo_original>
